<compile_context>
chip_gen: v5e
topology: v5e:2x2
jax: 0.10.0
libtpu: 0.0.40
codegen_flags: <defaults>
</compile_context>

<pallas_src>
import functools

import jax
import jax.numpy as jnp
from jax.experimental import pallas as pl
from jax.experimental.pallas import tpu as pltpu


def _conv_taps_kernel(w_ref, b_ref, g_ref, o_ref, *, phase_w):
    # w_ref: (9, Cout, 16) bf16  -- per-(a,b) tap weights (fused conv1+conv2)
    # b_ref: (Cout, 1)     f32   -- fused bias, added in f32
    # g_ref: (16, TILE_M+128) bf16 -- phase-channel slab for this M tile
    # o_ref: (Cout, TILE_M) f32  -- lane-dense store
    cout, tile_m = o_ref.shape
    g = g_ref[...]                                    # one VMEM load, sliced 9x below
    acc = jnp.zeros((cout, tile_m), jnp.float32)
    for a in range(3):
        for b in range(3):
            off = a * phase_w + b                     # static lane offset of this tap
            acc = acc + jnp.dot(w_ref[a * 3 + b], g[:, off:off + tile_m],
                                preferred_element_type=jnp.float32)
    o_ref[...] = jnp.maximum(acc + b_ref[...], 0.0)


def _round_up(a, b):
    return (a + b - 1) // b * b


def _num_tensorcores():
    # v7x has 2 TensorCores per chip; v5e/v6e have 1 -> 1 grid step there.
    try:
        kind = jax.devices()[0].device_kind.lower()
    except Exception:
        return 1
    return 2 if ("v7" in kind or "7x" in kind) else 1


def _fuse_weights(w3, w5):
    # Embed the 3x3/s2/p0 conv into the 5x5/s2/p1 conv's padded coordinate
    # frame: both read the same 5x5 padded window, conv1 at offset (+1,+1).
    return w5 + jnp.pad(w3, ((1, 1), (1, 1), (0, 0), (0, 0)))       # HWIO


def _forward_impl(x_nchw, params):
    w3, b3, w5, b5 = params                      # HWIO weights, (Cout,) biases
    n, cin, h, w = x_nchw.shape
    cout = w3.shape[-1]
    hp, wp = h + 2, w + 2                        # fused conv: 5x5, stride 2, pad 1
    oh = (hp - 5) // 2 + 1                       # valid output (== conv1's output)
    ow = (wp - 5) // 2 + 1
    ph_h, ph_w = hp // 2, wp // 2                # stride-2 phase-plane size (17,17)
    c_phase = 4 * cin                            # (ph,pw,ci) channels = 12
    c_pad = max(16, _round_up(c_phase, 8))       # bf16-friendly K per tap
    assert 2 * ph_w + 2 <= 128, "tap offsets must fit the +128 slab margin"

    # ---- grid / tile selection: 1 step on v5e/v6e, 2 on v7x (review) ----
    m = n * ph_h * ph_w                          # over-computed column count
    steps = max(1, min(_num_tensorcores(), pl.cdiv(m, 128)))
    tile_m = _round_up(pl.cdiv(m, steps), 128)
    m_pad = tile_m * steps
    gw = tile_m + 128                            # per-step slab width (covers +a*17+b)

    # ---- input: channel-leading, bf16, pad, stride-2 phase split (cheap) ----
    xc = jnp.transpose(x_nchw, (1, 0, 2, 3)).astype(jnp.bfloat16)   # (Cin,N,H,W)
    xp = jnp.pad(xc, ((0, 0), (0, 0), (1, 1), (1, 1)))              # (Cin,N,Hp,Wp)
    g = xp.reshape(cin, n, ph_h, 2, ph_w, 2)                        # hh=2i+ph, ww=2j+pw
    g = jnp.transpose(g, (3, 5, 0, 1, 2, 4))                        # (ph,pw,ci,n,i,j)
    g = g.reshape(c_phase, m)
    g = jnp.pad(g, ((0, c_pad - c_phase), (0, m_pad + 128 - m)))    # (16, m_pad+128)
    gsplit = jnp.stack([g[:, s * tile_m:s * tile_m + gw] for s in range(steps)])

    # ---- weights: fuse both convs, regroup into 9 (a,b) taps of K=16 ----
    wf = _fuse_weights(w3, w5).astype(jnp.float32)                  # (5,5,Cin,Cout)
    wf = jnp.pad(wf, ((0, 1), (0, 1), (0, 0), (0, 0)))              # taps kh/kw==5 -> 0
    wf = wf.reshape(3, 2, 3, 2, cin, cout)                          # (a,ph,b,pw,ci,co)
    wf = jnp.transpose(wf, (0, 2, 1, 3, 4, 5)).reshape(9, c_phase, cout)
    wf = jnp.pad(wf, ((0, 0), (0, c_pad - c_phase), (0, 0)))
    wt = jnp.transpose(wf, (0, 2, 1)).astype(jnp.bfloat16)          # (9, Cout, 16)

    bias = (b3 + b5).reshape(cout, 1).astype(jnp.float32)           # f32, in-kernel add

    kern = functools.partial(_conv_taps_kernel, phase_w=ph_w)
    out = pl.pallas_call(
        kern,
        out_shape=jax.ShapeDtypeStruct((cout, m_pad), jnp.float32),
        grid=(steps,),
        in_specs=[
            pl.BlockSpec((9, cout, c_pad), lambda i: (0, 0, 0)),    # taps: resident
            pl.BlockSpec((cout, 1), lambda i: (0, 0)),              # bias: resident
            pl.BlockSpec((None, c_pad, gw), lambda i: (i, 0, 0)),   # phase slab / step
        ],
        out_specs=pl.BlockSpec((cout, tile_m), lambda i: (0, i)),
        compiler_params=pltpu.CompilerParams(
            dimension_semantics=("parallel",)),
        cost_estimate=pl.CostEstimate(
            flops=2 * cout * c_pad * tile_m * 9 * steps,
            transcendentals=0,
            bytes_accessed=int(gsplit.size * 2 + wt.size * 2
                               + bias.size * 4 + cout * m_pad * 4)),
    )(wt, bias, gsplit)

    # (Cout, M') over-grid -> crop valid 15x15 -> NCHW.
    out = out[:, :m].reshape(cout, n, ph_h, ph_w)[:, :, :oh, :ow]
    return jnp.transpose(out, (1, 0, 2, 3))


model_forward = jax.jit(_forward_impl)


def _reference(x_nchw, params):
    w3, b3, w5, b5 = params
    x = jnp.transpose(x_nchw, (0, 2, 3, 1))
    dn = ('NHWC', 'HWIO', 'NHWC')
    v1 = jax.lax.conv_general_dilated(x, w3, (2, 2), 'VALID', dimension_numbers=dn) + b3
    v2 = jax.lax.conv_general_dilated(x, w5, (2, 2), ((1, 1), (1, 1)), dimension_numbers=dn) + b5
    return jnp.transpose(jnp.maximum(v1 + v2, 0.0), (0, 3, 1, 2))


if __name__ == "__main__":
    key = jax.random.PRNGKey(0)
    k1, k2, k3, k4, k5 = jax.random.split(key, 5)

    # Deterministic parameters (HWIO layout).
    w3 = jax.random.normal(k1, (3, 3, 3, 16), jnp.float32) * 0.1    # conv1: 3x3, s2, p0
    b3 = jax.random.normal(k2, (16,), jnp.float32) * 0.1
    w5 = jax.random.normal(k3, (5, 5, 3, 16), jnp.float32) * 0.05   # conv2 (adapted): 5x5, s2, p1
    b5 = jax.random.normal(k4, (16,), jnp.float32) * 0.1
    params = (w3, b3, w5, b5)

    # Small NCHW input consistent with the module (batch=2, channels=3, spatial=32).
    x = jax.random.normal(k5, (2, 3, 32, 32), jnp.float32)

    out = jax.block_until_ready(model_forward(x, params))
    ref = _reference(x, params)

    assert out.shape == (2, 16, 15, 15), out.shape
    assert jnp.allclose(out, ref, rtol=2e-2, atol=2e-2), "mismatch vs lax.conv reference"

    print("KERNEL_OK")
</pallas_src>

<mosaic_0001>
module attributes {stable_mosaic.version = 11 : i64} {
  func.func @_conv_taps_kernel(%arg0: i32, %arg1: memref<9x16x16xbf16, #tpu.memory_space<vmem>>, %arg2: memref<16x1xf32, #tpu.memory_space<vmem>>, %arg3: memref<1x16x768xbf16, #tpu.memory_space<vmem>>, %arg4: memref<16x640xf32, #tpu.memory_space<vmem>>) attributes {dimension_semantics = [#tpu.dimension_semantics<parallel>], iteration_bounds = array<i64: 1>, scalar_prefetch = 0 : i64, scratch_operands = 0 : i64, tpu.core_type = #tpu.core_type<tc>, window_params = [{pipeline_mode = #tpu.pipeline_mode<synchronous>, transform_indices = @transform_0, window_bounds = array<i64: 9, 16, 16>}, {pipeline_mode = #tpu.pipeline_mode<synchronous>, transform_indices = @transform_1, window_bounds = array<i64: 16, 1>}, {transform_indices = @transform_2, window_bounds = array<i64: 1, 16, 768>}, {transform_indices = @transform_3, window_bounds = array<i64: 16, 640>}]} {
    %c0 = arith.constant 0 : index
    %c0_0 = arith.constant 0 : index
    %c0_1 = arith.constant 0 : index
    %0 = vector.load %arg3[%c0, %c0_0, %c0_1] : memref<1x16x768xbf16, #tpu.memory_space<vmem>>, vector<1x16x768xbf16>
    %1 = vector.shape_cast %0 : vector<1x16x768xbf16> to vector<16x768xbf16>
    %cst = arith.constant 0.000000e+00 : f32
    %2 = vector.broadcast %cst : f32 to vector<16x640xf32>
    %c0_2 = arith.constant 0 : index
    %c0_3 = arith.constant 0 : index
    %c0_4 = arith.constant 0 : index
    %3 = vector.load %arg1[%c0_2, %c0_3, %c0_4] : memref<9x16x16xbf16, #tpu.memory_space<vmem>>, vector<1x16x16xbf16>
    %4 = vector.shape_cast %3 : vector<1x16x16xbf16> to vector<16x16xbf16>
    %5 = vector.extract_strided_slice %1 {offsets = [0, 0], sizes = [16, 640], strides = [1, 1]} : vector<16x768xbf16> to vector<16x640xbf16>
    %cst_5 = arith.constant dense<0.000000e+00> : vector<16x640xf32>
    %6 = tpu.matmul %4, %5, %cst_5 {dimension_numbers = #tpu.dot_dimension_numbers<[1], [0], [0], [1], [0, 0, 1, 1], [], []>} : vector<16x16xbf16>, vector<16x640xbf16>, vector<16x640xf32> -> vector<16x640xf32>
    %7 = arith.addf %2, %6 : vector<16x640xf32>
    %c1 = arith.constant 1 : index
    %c0_6 = arith.constant 0 : index
    %c0_7 = arith.constant 0 : index
    %8 = vector.load %arg1[%c1, %c0_6, %c0_7] : memref<9x16x16xbf16, #tpu.memory_space<vmem>>, vector<1x16x16xbf16>
    %9 = vector.shape_cast %8 : vector<1x16x16xbf16> to vector<16x16xbf16>
    %10 = vector.extract_strided_slice %1 {offsets = [0, 1], sizes = [16, 640], strides = [1, 1]} : vector<16x768xbf16> to vector<16x640xbf16>
    %cst_8 = arith.constant dense<0.000000e+00> : vector<16x640xf32>
    %11 = tpu.matmul %9, %10, %cst_8 {dimension_numbers = #tpu.dot_dimension_numbers<[1], [0], [0], [1], [0, 0, 1, 1], [], []>} : vector<16x16xbf16>, vector<16x640xbf16>, vector<16x640xf32> -> vector<16x640xf32>
    %12 = arith.addf %7, %11 : vector<16x640xf32>
    %c2 = arith.constant 2 : index
    %c0_9 = arith.constant 0 : index
    %c0_10 = arith.constant 0 : index
    %13 = vector.load %arg1[%c2, %c0_9, %c0_10] : memref<9x16x16xbf16, #tpu.memory_space<vmem>>, vector<1x16x16xbf16>
    %14 = vector.shape_cast %13 : vector<1x16x16xbf16> to vector<16x16xbf16>
    %15 = vector.extract_strided_slice %1 {offsets = [0, 2], sizes = [16, 640], strides = [1, 1]} : vector<16x768xbf16> to vector<16x640xbf16>
    %cst_11 = arith.constant dense<0.000000e+00> : vector<16x640xf32>
    %16 = tpu.matmul %14, %15, %cst_11 {dimension_numbers = #tpu.dot_dimension_numbers<[1], [0], [0], [1], [0, 0, 1, 1], [], []>} : vector<16x16xbf16>, vector<16x640xbf16>, vector<16x640xf32> -> vector<16x640xf32>
    %17 = arith.addf %12, %16 : vector<16x640xf32>
    %c3 = arith.constant 3 : index
    %c0_12 = arith.constant 0 : index
    %c0_13 = arith.constant 0 : index
    %18 = vector.load %arg1[%c3, %c0_12, %c0_13] : memref<9x16x16xbf16, #tpu.memory_space<vmem>>, vector<1x16x16xbf16>
    %19 = vector.shape_cast %18 : vector<1x16x16xbf16> to vector<16x16xbf16>
    %20 = vector.extract_strided_slice %1 {offsets = [0, 17], sizes = [16, 640], strides = [1, 1]} : vector<16x768xbf16> to vector<16x640xbf16>
    %cst_14 = arith.constant dense<0.000000e+00> : vector<16x640xf32>
    %21 = tpu.matmul %19, %20, %cst_14 {dimension_numbers = #tpu.dot_dimension_numbers<[1], [0], [0], [1], [0, 0, 1, 1], [], []>} : vector<16x16xbf16>, vector<16x640xbf16>, vector<16x640xf32> -> vector<16x640xf32>
    %22 = arith.addf %17, %21 : vector<16x640xf32>
    %c4 = arith.constant 4 : index
    %c0_15 = arith.constant 0 : index
    %c0_16 = arith.constant 0 : index
    %23 = vector.load %arg1[%c4, %c0_15, %c0_16] : memref<9x16x16xbf16, #tpu.memory_space<vmem>>, vector<1x16x16xbf16>
    %24 = vector.shape_cast %23 : vector<1x16x16xbf16> to vector<16x16xbf16>
    %25 = vector.extract_strided_slice %1 {offsets = [0, 18], sizes = [16, 640], strides = [1, 1]} : vector<16x768xbf16> to vector<16x640xbf16>
    %cst_17 = arith.constant dense<0.000000e+00> : vector<16x640xf32>
    %26 = tpu.matmul %24, %25, %cst_17 {dimension_numbers = #tpu.dot_dimension_numbers<[1], [0], [0], [1], [0, 0, 1, 1], [], []>} : vector<16x16xbf16>, vector<16x640xbf16>, vector<16x640xf32> -> vector<16x640xf32>
    %27 = arith.addf %22, %26 : vector<16x640xf32>
    %c5 = arith.constant 5 : index
    %c0_18 = arith.constant 0 : index
    %c0_19 = arith.constant 0 : index
    %28 = vector.load %arg1[%c5, %c0_18, %c0_19] : memref<9x16x16xbf16, #tpu.memory_space<vmem>>, vector<1x16x16xbf16>
    %29 = vector.shape_cast %28 : vector<1x16x16xbf16> to vector<16x16xbf16>
    %30 = vector.extract_strided_slice %1 {offsets = [0, 19], sizes = [16, 640], strides = [1, 1]} : vector<16x768xbf16> to vector<16x640xbf16>
    %cst_20 = arith.constant dense<0.000000e+00> : vector<16x640xf32>
    %31 = tpu.matmul %29, %30, %cst_20 {dimension_numbers = #tpu.dot_dimension_numbers<[1], [0], [0], [1], [0, 0, 1, 1], [], []>} : vector<16x16xbf16>, vector<16x640xbf16>, vector<16x640xf32> -> vector<16x640xf32>
    %32 = arith.addf %27, %31 : vector<16x640xf32>
    %c6 = arith.constant 6 : index
    %c0_21 = arith.constant 0 : index
    %c0_22 = arith.constant 0 : index
    %33 = vector.load %arg1[%c6, %c0_21, %c0_22] : memref<9x16x16xbf16, #tpu.memory_space<vmem>>, vector<1x16x16xbf16>
    %34 = vector.shape_cast %33 : vector<1x16x16xbf16> to vector<16x16xbf16>
    %35 = vector.extract_strided_slice %1 {offsets = [0, 34], sizes = [16, 640], strides = [1, 1]} : vector<16x768xbf16> to vector<16x640xbf16>
    %cst_23 = arith.constant dense<0.000000e+00> : vector<16x640xf32>
    %36 = tpu.matmul %34, %35, %cst_23 {dimension_numbers = #tpu.dot_dimension_numbers<[1], [0], [0], [1], [0, 0, 1, 1], [], []>} : vector<16x16xbf16>, vector<16x640xbf16>, vector<16x640xf32> -> vector<16x640xf32>
    %37 = arith.addf %32, %36 : vector<16x640xf32>
    %c7 = arith.constant 7 : index
    %c0_24 = arith.constant 0 : index
    %c0_25 = arith.constant 0 : index
    %38 = vector.load %arg1[%c7, %c0_24, %c0_25] : memref<9x16x16xbf16, #tpu.memory_space<vmem>>, vector<1x16x16xbf16>
    %39 = vector.shape_cast %38 : vector<1x16x16xbf16> to vector<16x16xbf16>
    %40 = vector.extract_strided_slice %1 {offsets = [0, 35], sizes = [16, 640], strides = [1, 1]} : vector<16x768xbf16> to vector<16x640xbf16>
    %cst_26 = arith.constant dense<0.000000e+00> : vector<16x640xf32>
    %41 = tpu.matmul %39, %40, %cst_26 {dimension_numbers = #tpu.dot_dimension_numbers<[1], [0], [0], [1], [0, 0, 1, 1], [], []>} : vector<16x16xbf16>, vector<16x640xbf16>, vector<16x640xf32> -> vector<16x640xf32>
    %42 = arith.addf %37, %41 : vector<16x640xf32>
    %c8 = arith.constant 8 : index
    %c0_27 = arith.constant 0 : index
    %c0_28 = arith.constant 0 : index
    %43 = vector.load %arg1[%c8, %c0_27, %c0_28] : memref<9x16x16xbf16, #tpu.memory_space<vmem>>, vector<1x16x16xbf16>
    %44 = vector.shape_cast %43 : vector<1x16x16xbf16> to vector<16x16xbf16>
    %45 = vector.extract_strided_slice %1 {offsets = [0, 36], sizes = [16, 640], strides = [1, 1]} : vector<16x768xbf16> to vector<16x640xbf16>
    %cst_29 = arith.constant dense<0.000000e+00> : vector<16x640xf32>
    %46 = tpu.matmul %44, %45, %cst_29 {dimension_numbers = #tpu.dot_dimension_numbers<[1], [0], [0], [1], [0, 0, 1, 1], [], []>} : vector<16x16xbf16>, vector<16x640xbf16>, vector<16x640xf32> -> vector<16x640xf32>
    %47 = arith.addf %42, %46 : vector<16x640xf32>
    %c0_30 = arith.constant 0 : index
    %c0_31 = arith.constant 0 : index
    %48 = vector.load %arg2[%c0_30, %c0_31] : memref<16x1xf32, #tpu.memory_space<vmem>>, vector<16x1xf32>
    %49 = vector.broadcast %48 : vector<16x1xf32> to vector<16x640xf32>
    %50 = arith.addf %47, %49 : vector<16x640xf32>
    %cst_32 = arith.constant 0.000000e+00 : f32
    %51 = vector.broadcast %cst_32 : f32 to vector<16x640xf32>
    %52 = arith.maximumf %50, %51 : vector<16x640xf32>
    %c0_33 = arith.constant 0 : index
    %c0_34 = arith.constant 0 : index
    %53 = vector.load %arg4[%c0_33, %c0_34] : memref<16x640xf32, #tpu.memory_space<vmem>>, vector<16x640xf32>
    tpu.vector_store %arg4[%c0_33, %c0_34], %52 {strides = array<i32>} : memref<16x640xf32, #tpu.memory_space<vmem>>, vector<16x640xf32>,
    return
  }
  func.func @transform_0(%arg0: i32) -> (i32, i32, i32) {
    %c0_i32 = arith.constant 0 : i32
    %c0_i32_0 = arith.constant 0 : i32
    %c0_i32_1 = arith.constant 0 : i32
    %c0_i32_2 = arith.constant 0 : i32
    return %c0_i32, %c0_i32_0, %c0_i32_1 : i32, i32, i32
  }
  func.func @transform_1(%arg0: i32) -> (i32, i32) {
    %c0_i32 = arith.constant 0 : i32
    %c0_i32_0 = arith.constant 0 : i32
    %c0_i32_1 = arith.constant 0 : i32
    return %c0_i32, %c0_i32_0 : i32, i32
  }
  func.func @transform_2(%arg0: i32) -> (i32, i32, i32) {
    %c0_i32 = arith.constant 0 : i32
    %c0_i32_0 = arith.constant 0 : i32
    %c0_i32_1 = arith.constant 0 : i32
    return %arg0, %c0_i32, %c0_i32_0 : i32, i32, i32
  }
  func.func @transform_3(%arg0: i32) -> (i32, i32) {
    %c0_i32 = arith.constant 0 : i32
    %c0_i32_0 = arith.constant 0 : i32
    return %c0_i32, %arg0 : i32, i32
  }
}

</mosaic_0001>

<llo_original>
// kernel: _forward_impl.1
$region0: #{_forward_impl.1}
  #allocation0 [shape = 'u32[]', space=smem, size = 0x4, offset = 0x4, fixed_abs, tag = 'smem constant byte address 0x4 - core index']
  #allocation1 [shape = 'u32[72,128]{1,0:T(1,128)}', space=vmem, size = 0x9000, scoped, tag = 'internal scratch']
  %s0 = inlined_call_operand.vmem [shape: bf16[9,16,16], index: 0, kind: input, shape index: {}]
  %s1 = inlined_call_operand.vmem [shape: f32[16,1], index: 1, kind: input, shape index: {}]
  %s2 = inlined_call_operand.vmem [shape: bf16[1,16,768], index: 2, kind: input, shape index: {}]
  %s3 = inlined_call_operand.vmem [shape: f32[16,640], index: 3, kind: output, shape index: {}]
  %s4 = sld [smem:[#allocation0]]
  $region22: #{_forward_impl.1} parent=0
    _
  %s6 = ssub.s32 1, %s4
  %s7 = scalar_select 0, %s6, %s4
  // Predicated region
  $region2: #{_forward_impl.1} parent=0 // pred_check
    _
  $region3: #{_forward_impl.1} parent=0 // pred_check_branch
    %9 = sbr.rel (0) target = $region5
  $region4: #{_forward_impl.1} parent=0 // pred_region
    _
  $region5: #{_forward_impl.1} parent=0 // pred_fallthru
    _
  // Predicated region
  $region6: #{_forward_impl.1} parent=0 // pred_check
    _
  $region7: #{_forward_impl.1} parent=0 // pred_check_branch
    %11 = sbr.rel (0) target = $region9
  $region8: #{_forward_impl.1} parent=0 // pred_region
    _
  $region9: #{_forward_impl.1} parent=0 // pred_fallthru
    _
  // Predicated region
  $region10: #{_forward_impl.1} parent=0 // pred_check
    _
  $region11: #{_forward_impl.1} parent=0 // pred_check_branch
    %13 = sbr.rel (0) target = $region13
  $region12: #{_forward_impl.1} parent=0 // pred_region
    _
  $region13: #{_forward_impl.1} parent=0 // pred_fallthru
    _
  %v15 = vld [vmem:[%s2] sm:$0xff]
  %v16 = vld [vmem:[%s2 + $0x8] sm:$0xff]
  %v17 = vld [vmem:[%s2 + $0x10] sm:$0xff]
  %v18 = vld [vmem:[%s2 + $0x18] sm:$0xff]
  %v19 = vld [vmem:[%s2 + $0x20] sm:$0xff]
  %v20 = vld [vmem:[%s2 + $0x28] sm:$0xff]
  %v21 = vld [vmem:[%s0] sm:$0xf]
  %v22 = vld [vmem:[%s0 + $0x4] sm:$0xf]
  %s23 = scalar_lea.vmem %s0, 8
  %v24 = vld [vmem:[%s23] sm:$0xf]
  %v25 = vld [vmem:[%s23 + $0x4] sm:$0xf]
  %v28 = vunpack.c.l.b16 %v24
  %v29 = vunpack.c.l.b16 %v25
  %v30 = vpack.c.b16 %v29, %v28
  %v37 = vunpack.c.l.b16 %v15
  %v38 = vunpack.c.h.b16 %v15
  %v39 = vunpack.c.l.b16 %v16
  %v40 = vunpack.c.h.b16 %v16
  %v41 = vunpack.c.l.b16 %v17
  %v42 = vunpack.c.h.b16 %v17
  %v43 = vunpack.c.l.b16 %v18
  %v44 = vunpack.c.h.b16 %v18
  %v45 = vunpack.c.l.b16 %v19
  %v46 = vunpack.c.h.b16 %v19
  %v47 = vunpack.c.l.b16 %v20
  %v48 = vunpack.c.h.b16 %v20
  %v49 = vpack.c.b16 %v43, %v37
  %v50 = vpack.c.b16 %v44, %v38
  %v51 = vpack.c.b16 %v45, %v39
  %v52 = vpack.c.b16 %v46, %v40
  %v53 = vpack.c.b16 %v47, %v41
  %v54 = vpack.c.b16 %v48, %v42
  %55 = vrot.lane.b32.xlu0 %v49, 127
  %v56 = vpop.permute.xlu0 %55
  %57 = vrot.lane.b32.xlu0 %v50, 127
  %v58 = vpop.permute.xlu0 %57
  %59 = vrot.lane.b32.xlu0 %v51, 127
  %v60 = vpop.permute.xlu0 %59
  %61 = vrot.lane.b32.xlu0 %v52, 127
  %v62 = vpop.permute.xlu0 %61
  %63 = vrot.lane.b32.xlu0 %v53, 127
  %v64 = vpop.permute.xlu0 %63
  %65 = vrot.lane.b32.xlu0 %v54, 127
  %v66 = vpop.permute.xlu0 %65
  %vm67 = vcmask 1039360
  %v68 = vsel %vm67, %v56, %v58
  %v69 = vsel %vm67, %v58, %v60
  %v70 = vsel %vm67, %v60, %v62
  %v71 = vsel %vm67, %v62, %v64
  %v72 = vsel %vm67, %v64, %v66
  %vm78 = vcmask 130048
  %v80 = vsel %vm78, %v30, 0
  %82 = vmatpush.bf16.msra.mxu0 0
  %83 = vmatpush.bf16.msra.mxu0 0
  %84 = vmatpush.bf16.msra.mxu0 0
  %85 = vmatpush.bf16.msra.mxu0 0
  %86 = vmatpush.bf16.msra.mxu0 0
  %87 = vmatpush.bf16.msra.mxu0 0
  %88 = vmatpush.bf16.msra.mxu0 0
  %89 = vmatpush.bf16.msra.mxu0 %v68
  %90 = vmatmul.bf16.gmra.mxu0 %v80
  %v91 = vpop.f32.mrf.mxu0
  %v92 = vadd.f32 0.0, %v91
  %v93 = vpop.f32.mrf.mxu0
  %v94 = vadd.f32 0.0, %v93
  %95 = vdwg.mxu0
  %96 = vmatpush.bf16.msra.mxu0 0
  %97 = vmatpush.bf16.msra.mxu0 0
  %98 = vmatpush.bf16.msra.mxu0 0
  %99 = vmatpush.bf16.msra.mxu0 0
  %100 = vmatpush.bf16.msra.mxu0 0
  %101 = vmatpush.bf16.msra.mxu0 0
  %102 = vmatpush.bf16.msra.mxu0 0
  %103 = vmatpush.bf16.msra.mxu0 %v69
  %104 = vmatmul.bf16.gmra.mxu0 %v80
  %v105 = vpop.f32.mrf.mxu0
  %v106 = vadd.f32 0.0, %v105
  %v107 = vpop.f32.mrf.mxu0
  %v108 = vadd.f32 0.0, %v107
  %109 = vdwg.mxu0
  %110 = vmatpush.bf16.msra.mxu0 0
  %111 = vmatpush.bf16.msra.mxu0 0
  %112 = vmatpush.bf16.msra.mxu0 0
  %113 = vmatpush.bf16.msra.mxu0 0
  %114 = vmatpush.bf16.msra.mxu0 0
  %115 = vmatpush.bf16.msra.mxu0 0
  %116 = vmatpush.bf16.msra.mxu0 0
  %117 = vmatpush.bf16.msra.mxu0 %v70
  %118 = vmatmul.bf16.gmra.mxu0 %v80
  %v119 = vpop.f32.mrf.mxu0
  %v120 = vadd.f32 0.0, %v119
  %v121 = vpop.f32.mrf.mxu0
  %v122 = vadd.f32 0.0, %v121
  %123 = vdwg.mxu0
  %124 = vmatpush.bf16.msra.mxu0 0
  %125 = vmatpush.bf16.msra.mxu0 0
  %126 = vmatpush.bf16.msra.mxu0 0
  %127 = vmatpush.bf16.msra.mxu0 0
  %128 = vmatpush.bf16.msra.mxu0 0
  %129 = vmatpush.bf16.msra.mxu0 0
  %130 = vmatpush.bf16.msra.mxu0 0
  %131 = vmatpush.bf16.msra.mxu0 %v71
  %132 = vmatmul.bf16.gmra.mxu0 %v80
  %v133 = vpop.f32.mrf.mxu0
  %v134 = vadd.f32 0.0, %v133
  %v135 = vpop.f32.mrf.mxu0
  %v136 = vadd.f32 0.0, %v135
  %137 = vdwg.mxu0
  %138 = vmatpush.bf16.msra.mxu0 0
  %139 = vmatpush.bf16.msra.mxu0 0
  %140 = vmatpush.bf16.msra.mxu0 0
  %141 = vmatpush.bf16.msra.mxu0 0
  %142 = vmatpush.bf16.msra.mxu0 0
  %143 = vmatpush.bf16.msra.mxu0 0
  %144 = vmatpush.bf16.msra.mxu0 0
  %145 = vmatpush.bf16.msra.mxu0 %v72
  %146 = vmatmul.bf16.gmra.mxu0 %v80
  %v147 = vpop.f32.mrf.mxu0
  %v148 = vadd.f32 0.0, %v147
  %v149 = vpop.f32.mrf.mxu0
  %v150 = vadd.f32 0.0, %v149
  %151 = vdwg.mxu0
  %v154 = vunpack.c.l.b16 %v21
  %v155 = vunpack.c.l.b16 %v22
  %v156 = vpack.c.b16 %v155, %v154
  %v163 = vsel %vm78, %v156, 0
  %165 = vmatpush.bf16.msra.mxu0 0
  %166 = vmatpush.bf16.msra.mxu0 0
  %167 = vmatpush.bf16.msra.mxu0 0
  %168 = vmatpush.bf16.msra.mxu0 0
  %169 = vmatpush.bf16.msra.mxu0 0
  %170 = vmatpush.bf16.msra.mxu0 0
  %171 = vmatpush.bf16.msra.mxu0 0
  %172 = vmatpush.bf16.msra.mxu0 %v49
  %173 = vmatmul.bf16.gmra.mxu0 %v163
  %v174 = vpop.f32.mrf.mxu0
  %v175 = vadd.f32 %v92, %v174
  %v176 = vpop.f32.mrf.mxu0
  %v177 = vadd.f32 %v94, %v176
  %178 = vdwg.mxu0
  %179 = vmatpush.bf16.msra.mxu0 0
  %180 = vmatpush.bf16.msra.mxu0 0
  %181 = vmatpush.bf16.msra.mxu0 0
  %182 = vmatpush.bf16.msra.mxu0 0
  %183 = vmatpush.bf16.msra.mxu0 0
  %184 = vmatpush.bf16.msra.mxu0 0
  %185 = vmatpush.bf16.msra.mxu0 0
  %186 = vmatpush.bf16.msra.mxu0 %v50
  %187 = vmatmul.bf16.gmra.mxu0 %v163
  %v188 = vpop.f32.mrf.mxu0
  %v189 = vadd.f32 %v106, %v188
  %v190 = vpop.f32.mrf.mxu0
  %v191 = vadd.f32 %v108, %v190
  %192 = vdwg.mxu0
  %193 = vmatpush.bf16.msra.mxu0 0
  %194 = vmatpush.bf16.msra.mxu0 0
  %195 = vmatpush.bf16.msra.mxu0 0
  %196 = vmatpush.bf16.msra.mxu0 0
  %197 = vmatpush.bf16.msra.mxu0 0
  %198 = vmatpush.bf16.msra.mxu0 0
  %199 = vmatpush.bf16.msra.mxu0 0
  %200 = vmatpush.bf16.msra.mxu0 %v51
  %201 = vmatmul.bf16.gmra.mxu0 %v163
  %v202 = vpop.f32.mrf.mxu0
  %v203 = vadd.f32 %v120, %v202
  %v204 = vpop.f32.mrf.mxu0
  %v205 = vadd.f32 %v122, %v204
  %206 = vdwg.mxu0
  %207 = vmatpush.bf16.msra.mxu0 0
  %208 = vmatpush.bf16.msra.mxu0 0
  %209 = vmatpush.bf16.msra.mxu0 0
  %210 = vmatpush.bf16.msra.mxu0 0
  %211 = vmatpush.bf16.msra.mxu0 0
  %212 = vmatpush.bf16.msra.mxu0 0
  %213 = vmatpush.bf16.msra.mxu0 0
  %214 = vmatpush.bf16.msra.mxu0 %v52
  %215 = vmatmul.bf16.gmra.mxu0 %v163
  %v216 = vpop.f32.mrf.mxu0
  %v217 = vadd.f32 %v134, %v216
  %v218 = vpop.f32.mrf.mxu0
  %v219 = vadd.f32 %v136, %v218
  %220 = vdwg.mxu0
  %221 = vmatpush.bf16.msra.mxu0 0
  %222 = vmatpush.bf16.msra.mxu0 0
  %223 = vmatpush.bf16.msra.mxu0 0
  %224 = vmatpush.bf16.msra.mxu0 0
  %225 = vmatpush.bf16.msra.mxu0 0
  %226 = vmatpush.bf16.msra.mxu0 0
  %227 = vmatpush.bf16.msra.mxu0 0
  %228 = vmatpush.bf16.msra.mxu0 %v53
  %229 = vmatmul.bf16.gmra.mxu0 %v163
  %v230 = vpop.f32.mrf.mxu0
  %v231 = vadd.f32 %v148, %v230
  %v232 = vpop.f32.mrf.mxu0
  %v233 = vadd.f32 %v150, %v232
  %234 = vdwg.mxu0
  %s235 = scalar_lea.vmem %s0, 16
  %v236 = vld [vmem:[%s235] sm:$0xf]
  %v237 = vld [vmem:[%s235 + $0x4] sm:$0xf]
  %v240 = vunpack.c.l.b16 %v236
  %v241 = vunpack.c.l.b16 %v237
  %v242 = vpack.c.b16 %v241, %v240
  %243 = vrot.lane.b32.xlu0 %v49, 126
  %v244 = vpop.permute.xlu0 %243
  %245 = vrot.lane.b32.xlu0 %v50, 126
  %v246 = vpop.permute.xlu0 %245
  %247 = vrot.lane.b32.xlu0 %v51, 126
  %v248 = vpop.permute.xlu0 %247
  %249 = vrot.lane.b32.xlu0 %v52, 126
  %v250 = vpop.permute.xlu0 %249
  %251 = vrot.lane.b32.xlu0 %v53, 126
  %v252 = vpop.permute.xlu0 %251
  %253 = vrot.lane.b32.xlu0 %v54, 126
  %v254 = vpop.permute.xlu0 %253
  %vm255 = vcmask 1031168
  %v256 = vsel %vm255, %v244, %v246
  %v257 = vsel %vm255, %v246, %v248
  %v258 = vsel %vm255, %v248, %v250
  %v259 = vsel %vm255, %v250, %v252
  %v260 = vsel %vm255, %v252, %v254
  %v267 = vsel %vm78, %v242, 0
  %269 = vmatpush.bf16.msra.mxu0 0
  %270 = vmatpush.bf16.msra.mxu0 0
  %271 = vmatpush.bf16.msra.mxu0 0
  %272 = vmatpush.bf16.msra.mxu0 0
  %273 = vmatpush.bf16.msra.mxu0 0
  %274 = vmatpush.bf16.msra.mxu0 0
  %275 = vmatpush.bf16.msra.mxu0 0
  %276 = vmatpush.bf16.msra.mxu0 %v256
  %277 = vmatmul.bf16.gmra.mxu0 %v267
  %v278 = vpop.f32.mrf.mxu0
  %v279 = vadd.f32 0.0, %v278
  %v280 = vpop.f32.mrf.mxu0
  %v281 = vadd.f32 0.0, %v280
  %282 = vdwg.mxu0
  %283 = vmatpush.bf16.msra.mxu0 0
  %284 = vmatpush.bf16.msra.mxu0 0
  %285 = vmatpush.bf16.msra.mxu0 0
  %286 = vmatpush.bf16.msra.mxu0 0
  %287 = vmatpush.bf16.msra.mxu0 0
  %288 = vmatpush.bf16.msra.mxu0 0
  %289 = vmatpush.bf16.msra.mxu0 0
  %290 = vmatpush.bf16.msra.mxu0 %v257
  %291 = vmatmul.bf16.gmra.mxu0 %v267
  %v292 = vpop.f32.mrf.mxu0
  %v293 = vadd.f32 0.0, %v292
  %v294 = vpop.f32.mrf.mxu0
  %v295 = vadd.f32 0.0, %v294
  %296 = vdwg.mxu0
  %297 = vmatpush.bf16.msra.mxu0 0
  %298 = vmatpush.bf16.msra.mxu0 0
  %299 = vmatpush.bf16.msra.mxu0 0
  %300 = vmatpush.bf16.msra.mxu0 0
  %301 = vmatpush.bf16.msra.mxu0 0
  %302 = vmatpush.bf16.msra.mxu0 0
  %303 = vmatpush.bf16.msra.mxu0 0
  %304 = vmatpush.bf16.msra.mxu0 %v258
  %305 = vmatmul.bf16.gmra.mxu0 %v267
  %v306 = vpop.f32.mrf.mxu0
  %v307 = vadd.f32 0.0, %v306
  %v308 = vpop.f32.mrf.mxu0
  %v309 = vadd.f32 0.0, %v308
  %310 = vdwg.mxu0
  %311 = vmatpush.bf16.msra.mxu0 0
  %312 = vmatpush.bf16.msra.mxu0 0
  %313 = vmatpush.bf16.msra.mxu0 0
  %314 = vmatpush.bf16.msra.mxu0 0
  %315 = vmatpush.bf16.msra.mxu0 0
  %316 = vmatpush.bf16.msra.mxu0 0
  %317 = vmatpush.bf16.msra.mxu0 0
  %318 = vmatpush.bf16.msra.mxu0 %v259
  %319 = vmatmul.bf16.gmra.mxu0 %v267
  %v320 = vpop.f32.mrf.mxu0
  %v321 = vadd.f32 0.0, %v320
  %v322 = vpop.f32.mrf.mxu0
  %v323 = vadd.f32 0.0, %v322
  %324 = vdwg.mxu0
  %325 = vmatpush.bf16.msra.mxu0 0
  %326 = vmatpush.bf16.msra.mxu0 0
  %327 = vmatpush.bf16.msra.mxu0 0
  %328 = vmatpush.bf16.msra.mxu0 0
  %329 = vmatpush.bf16.msra.mxu0 0
  %330 = vmatpush.bf16.msra.mxu0 0
  %331 = vmatpush.bf16.msra.mxu0 0
  %332 = vmatpush.bf16.msra.mxu0 %v260
  %333 = vmatmul.bf16.gmra.mxu0 %v267
  %v334 = vpop.f32.mrf.mxu0
  %v335 = vadd.f32 0.0, %v334
  %v336 = vpop.f32.mrf.mxu0
  %v337 = vadd.f32 0.0, %v336
  %338 = vdwg.mxu0
  %v339 = vadd.f32 %v175, %v279
  %v340 = vadd.f32 %v189, %v293
  %v341 = vadd.f32 %v203, %v307
  %v342 = vadd.f32 %v217, %v321
  %v343 = vadd.f32 %v231, %v335
  %v344 = vadd.f32 %v177, %v281
  %v345 = vadd.f32 %v191, %v295
  %v346 = vadd.f32 %v205, %v309
  %v347 = vadd.f32 %v219, %v323
  %v348 = vadd.f32 %v233, %v337
  %s349 = scalar_lea.vmem %s0, 24
  %v350 = vld [vmem:[%s349] sm:$0xf]
  %v351 = vld [vmem:[%s349 + $0x4] sm:$0xf]
  %v354 = vunpack.c.l.b16 %v350
  %v355 = vunpack.c.l.b16 %v351
  %v356 = vpack.c.b16 %v355, %v354
  %357 = vrot.lane.b32.xlu0 %v49, 111
  %v358 = vpop.permute.xlu0 %357
  %359 = vrot.lane.b32.xlu0 %v50, 111
  %v360 = vpop.permute.xlu0 %359
  %361 = vrot.lane.b32.xlu0 %v51, 111
  %v362 = vpop.permute.xlu0 %361
  %363 = vrot.lane.b32.xlu0 %v52, 111
  %v364 = vpop.permute.xlu0 %363
  %365 = vrot.lane.b32.xlu0 %v53, 111
  %v366 = vpop.permute.xlu0 %365
  %367 = vrot.lane.b32.xlu0 %v54, 111
  %v368 = vpop.permute.xlu0 %367
  %vm369 = vcmask 908288
  %v370 = vsel %vm369, %v358, %v360
  %v371 = vsel %vm369, %v360, %v362
  %v372 = vsel %vm369, %v362, %v364
  %v373 = vsel %vm369, %v364, %v366
  %v374 = vsel %vm369, %v366, %v368
  %v381 = vsel %vm78, %v356, 0
  %383 = vmatpush.bf16.msra.mxu0 0
  %384 = vmatpush.bf16.msra.mxu0 0
  %385 = vmatpush.bf16.msra.mxu0 0
  %386 = vmatpush.bf16.msra.mxu0 0
  %387 = vmatpush.bf16.msra.mxu0 0
  %388 = vmatpush.bf16.msra.mxu0 0
  %389 = vmatpush.bf16.msra.mxu0 0
  %390 = vmatpush.bf16.msra.mxu0 %v370
  %391 = vmatmul.bf16.gmra.mxu0 %v381
  %v392 = vpop.f32.mrf.mxu0
  %v393 = vadd.f32 0.0, %v392
  %v394 = vpop.f32.mrf.mxu0
  %v395 = vadd.f32 0.0, %v394
  %396 = vdwg.mxu0
  %397 = vmatpush.bf16.msra.mxu0 0
  %398 = vmatpush.bf16.msra.mxu0 0
  %399 = vmatpush.bf16.msra.mxu0 0
  %400 = vmatpush.bf16.msra.mxu0 0
  %401 = vmatpush.bf16.msra.mxu0 0
  %402 = vmatpush.bf16.msra.mxu0 0
  %403 = vmatpush.bf16.msra.mxu0 0
  %404 = vmatpush.bf16.msra.mxu0 %v371
  %405 = vmatmul.bf16.gmra.mxu0 %v381
  %v406 = vpop.f32.mrf.mxu0
  %v407 = vadd.f32 0.0, %v406
  %v408 = vpop.f32.mrf.mxu0
  %v409 = vadd.f32 0.0, %v408
  %410 = vdwg.mxu0
  %411 = vmatpush.bf16.msra.mxu0 0
  %412 = vmatpush.bf16.msra.mxu0 0
  %413 = vmatpush.bf16.msra.mxu0 0
  %414 = vmatpush.bf16.msra.mxu0 0
  %415 = vmatpush.bf16.msra.mxu0 0
  %416 = vmatpush.bf16.msra.mxu0 0
  %417 = vmatpush.bf16.msra.mxu0 0
  %418 = vmatpush.bf16.msra.mxu0 %v372
  %419 = vmatmul.bf16.gmra.mxu0 %v381
  %v420 = vpop.f32.mrf.mxu0
  %v421 = vadd.f32 0.0, %v420
  %v422 = vpop.f32.mrf.mxu0
  %v423 = vadd.f32 0.0, %v422
  %424 = vdwg.mxu0
  %425 = vmatpush.bf16.msra.mxu0 0
  %426 = vmatpush.bf16.msra.mxu0 0
  %427 = vmatpush.bf16.msra.mxu0 0
  %428 = vmatpush.bf16.msra.mxu0 0
  %429 = vmatpush.bf16.msra.mxu0 0
  %430 = vmatpush.bf16.msra.mxu0 0
  %431 = vmatpush.bf16.msra.mxu0 0
  %432 = vmatpush.bf16.msra.mxu0 %v373
  %433 = vmatmul.bf16.gmra.mxu0 %v381
  %v434 = vpop.f32.mrf.mxu0
  %v435 = vadd.f32 0.0, %v434
  %v436 = vpop.f32.mrf.mxu0
  %v437 = vadd.f32 0.0, %v436
  %438 = vdwg.mxu0
  %439 = vmatpush.bf16.msra.mxu0 0
  %440 = vmatpush.bf16.msra.mxu0 0
  %441 = vmatpush.bf16.msra.mxu0 0
  %442 = vmatpush.bf16.msra.mxu0 0
  %443 = vmatpush.bf16.msra.mxu0 0
  %444 = vmatpush.bf16.msra.mxu0 0
  %445 = vmatpush.bf16.msra.mxu0 0
  %446 = vmatpush.bf16.msra.mxu0 %v374
  %447 = vmatmul.bf16.gmra.mxu0 %v381
  %v448 = vpop.f32.mrf.mxu0
  %v449 = vadd.f32 0.0, %v448
  %v450 = vpop.f32.mrf.mxu0
  %v451 = vadd.f32 0.0, %v450
  %452 = vdwg.mxu0
  %v453 = vadd.f32 %v339, %v393
  %v454 = vadd.f32 %v340, %v407
  %v455 = vadd.f32 %v341, %v421
  %v456 = vadd.f32 %v342, %v435
  %v457 = vadd.f32 %v343, %v449
  %v458 = vadd.f32 %v344, %v395
  %v459 = vadd.f32 %v345, %v409
  %v460 = vadd.f32 %v346, %v423
  %v461 = vadd.f32 %v347, %v437
  %v462 = vadd.f32 %v348, %v451
  %s463 = scalar_lea.vmem %s0, 32
  %v464 = vld [vmem:[%s463] sm:$0xf]
  %v465 = vld [vmem:[%s463 + $0x4] sm:$0xf]
  %v468 = vunpack.c.l.b16 %v464
  %v469 = vunpack.c.l.b16 %v465
  %v470 = vpack.c.b16 %v469, %v468
  %471 = vrot.lane.b32.xlu0 %v49, 110
  %v472 = vpop.permute.xlu0 %471
  %473 = vrot.lane.b32.xlu0 %v50, 110
  %v474 = vpop.permute.xlu0 %473
  %475 = vrot.lane.b32.xlu0 %v51, 110
  %v476 = vpop.permute.xlu0 %475
  %477 = vrot.lane.b32.xlu0 %v52, 110
  %v478 = vpop.permute.xlu0 %477
  %479 = vrot.lane.b32.xlu0 %v53, 110
  %v480 = vpop.permute.xlu0 %479
  %481 = vrot.lane.b32.xlu0 %v54, 110
  %v482 = vpop.permute.xlu0 %481
  %vm483 = vcmask 900096
  %v484 = vsel %vm483, %v472, %v474
  %v485 = vsel %vm483, %v474, %v476
  %v486 = vsel %vm483, %v476, %v478
  %v487 = vsel %vm483, %v478, %v480
  %v488 = vsel %vm483, %v480, %v482
  %v495 = vsel %vm78, %v470, 0
  %497 = vmatpush.bf16.msra.mxu0 0
  %498 = vmatpush.bf16.msra.mxu0 0
  %499 = vmatpush.bf16.msra.mxu0 0
  %500 = vmatpush.bf16.msra.mxu0 0
  %501 = vmatpush.bf16.msra.mxu0 0
  %502 = vmatpush.bf16.msra.mxu0 0
  %503 = vmatpush.bf16.msra.mxu0 0
  %504 = vmatpush.bf16.msra.mxu0 %v484
  %505 = vmatmul.bf16.gmra.mxu0 %v495
  %v506 = vpop.f32.mrf.mxu0
  %v507 = vadd.f32 0.0, %v506
  %v508 = vpop.f32.mrf.mxu0
  %v509 = vadd.f32 0.0, %v508
  %510 = vdwg.mxu0
  %511 = vmatpush.bf16.msra.mxu0 0
  %512 = vmatpush.bf16.msra.mxu0 0
  %513 = vmatpush.bf16.msra.mxu0 0
  %514 = vmatpush.bf16.msra.mxu0 0
  %515 = vmatpush.bf16.msra.mxu0 0
  %516 = vmatpush.bf16.msra.mxu0 0
  %517 = vmatpush.bf16.msra.mxu0 0
  %518 = vmatpush.bf16.msra.mxu0 %v485
  %519 = vmatmul.bf16.gmra.mxu0 %v495
  %v520 = vpop.f32.mrf.mxu0
  %v521 = vadd.f32 0.0, %v520
  %v522 = vpop.f32.mrf.mxu0
  %v523 = vadd.f32 0.0, %v522
  %524 = vdwg.mxu0
  %525 = vmatpush.bf16.msra.mxu0 0
  %526 = vmatpush.bf16.msra.mxu0 0
  %527 = vmatpush.bf16.msra.mxu0 0
  %528 = vmatpush.bf16.msra.mxu0 0
  %529 = vmatpush.bf16.msra.mxu0 0
  %530 = vmatpush.bf16.msra.mxu0 0
  %531 = vmatpush.bf16.msra.mxu0 0
  %532 = vmatpush.bf16.msra.mxu0 %v486
  %533 = vmatmul.bf16.gmra.mxu0 %v495
  %v534 = vpop.f32.mrf.mxu0
  %v535 = vadd.f32 0.0, %v534
  %v536 = vpop.f32.mrf.mxu0
  %v537 = vadd.f32 0.0, %v536
  %538 = vdwg.mxu0
  %539 = vmatpush.bf16.msra.mxu0 0
  %540 = vmatpush.bf16.msra.mxu0 0
  %541 = vmatpush.bf16.msra.mxu0 0
  %542 = vmatpush.bf16.msra.mxu0 0
  %543 = vmatpush.bf16.msra.mxu0 0
  %544 = vmatpush.bf16.msra.mxu0 0
  %545 = vmatpush.bf16.msra.mxu0 0
  %546 = vmatpush.bf16.msra.mxu0 %v487
  %547 = vmatmul.bf16.gmra.mxu0 %v495
  %v548 = vpop.f32.mrf.mxu0
  %v549 = vadd.f32 0.0, %v548
  %v550 = vpop.f32.mrf.mxu0
  %v551 = vadd.f32 0.0, %v550
  %552 = vdwg.mxu0
  %553 = vmatpush.bf16.msra.mxu0 0
  %554 = vmatpush.bf16.msra.mxu0 0
  %555 = vmatpush.bf16.msra.mxu0 0
  %556 = vmatpush.bf16.msra.mxu0 0
  %557 = vmatpush.bf16.msra.mxu0 0
  %558 = vmatpush.bf16.msra.mxu0 0
  %559 = vmatpush.bf16.msra.mxu0 0
  %560 = vmatpush.bf16.msra.mxu0 %v488
  %561 = vmatmul.bf16.gmra.mxu0 %v495
  %v562 = vpop.f32.mrf.mxu0
  %v563 = vadd.f32 0.0, %v562
  %v564 = vpop.f32.mrf.mxu0
  %v565 = vadd.f32 0.0, %v564
  %566 = vdwg.mxu0
  %v567 = vadd.f32 %v453, %v507
  %v568 = vadd.f32 %v454, %v521
  %v569 = vadd.f32 %v455, %v535
  %v570 = vadd.f32 %v456, %v549
  %v571 = vadd.f32 %v457, %v563
  %v572 = vadd.f32 %v458, %v509
  %v573 = vadd.f32 %v459, %v523
  %v574 = vadd.f32 %v460, %v537
  %v575 = vadd.f32 %v461, %v551
  %v576 = vadd.f32 %v462, %v565
  %s577 = scalar_lea.vmem %s0, 40
  %v578 = vld [vmem:[%s577] sm:$0xf]
  %v579 = vld [vmem:[%s577 + $0x4] sm:$0xf]
  %v582 = vunpack.c.l.b16 %v578
  %v583 = vunpack.c.l.b16 %v579
  %v584 = vpack.c.b16 %v583, %v582
  %585 = vrot.lane.b32.xlu0 %v49, 109
  %v586 = vpop.permute.xlu0 %585
  %587 = vrot.lane.b32.xlu0 %v50, 109
  %v588 = vpop.permute.xlu0 %587
  %589 = vrot.lane.b32.xlu0 %v51, 109
  %v590 = vpop.permute.xlu0 %589
  %591 = vrot.lane.b32.xlu0 %v52, 109
  %v592 = vpop.permute.xlu0 %591
  %593 = vrot.lane.b32.xlu0 %v53, 109
  %v594 = vpop.permute.xlu0 %593
  %595 = vrot.lane.b32.xlu0 %v54, 109
  %v596 = vpop.permute.xlu0 %595
  %vm597 = vcmask 891904
  %v598 = vsel %vm597, %v586, %v588
  %v599 = vsel %vm597, %v588, %v590
  %v600 = vsel %vm597, %v590, %v592
  %v601 = vsel %vm597, %v592, %v594
  %v602 = vsel %vm597, %v594, %v596
  %v609 = vsel %vm78, %v584, 0
  %611 = vmatpush.bf16.msra.mxu0 0
  %612 = vmatpush.bf16.msra.mxu0 0
  %613 = vmatpush.bf16.msra.mxu0 0
  %614 = vmatpush.bf16.msra.mxu0 0
  %615 = vmatpush.bf16.msra.mxu0 0
  %616 = vmatpush.bf16.msra.mxu0 0
  %617 = vmatpush.bf16.msra.mxu0 0
  %618 = vmatpush.bf16.msra.mxu0 %v598
  %619 = vmatmul.bf16.gmra.mxu0 %v609
  %v620 = vpop.f32.mrf.mxu0
  %v621 = vadd.f32 0.0, %v620
  %v622 = vpop.f32.mrf.mxu0
  %v623 = vadd.f32 0.0, %v622
  %624 = vdwg.mxu0
  %625 = vmatpush.bf16.msra.mxu0 0
  %626 = vmatpush.bf16.msra.mxu0 0
  %627 = vmatpush.bf16.msra.mxu0 0
  %628 = vmatpush.bf16.msra.mxu0 0
  %629 = vmatpush.bf16.msra.mxu0 0
  %630 = vmatpush.bf16.msra.mxu0 0
  %631 = vmatpush.bf16.msra.mxu0 0
  %632 = vmatpush.bf16.msra.mxu0 %v599
  %633 = vmatmul.bf16.gmra.mxu0 %v609
  %v634 = vpop.f32.mrf.mxu0
  %v635 = vadd.f32 0.0, %v634
  %v636 = vpop.f32.mrf.mxu0
  %v637 = vadd.f32 0.0, %v636
  %638 = vdwg.mxu0
  %639 = vmatpush.bf16.msra.mxu0 0
  %640 = vmatpush.bf16.msra.mxu0 0
  %641 = vmatpush.bf16.msra.mxu0 0
  %642 = vmatpush.bf16.msra.mxu0 0
  %643 = vmatpush.bf16.msra.mxu0 0
  %644 = vmatpush.bf16.msra.mxu0 0
  %645 = vmatpush.bf16.msra.mxu0 0
  %646 = vmatpush.bf16.msra.mxu0 %v600
  %647 = vmatmul.bf16.gmra.mxu0 %v609
  %v648 = vpop.f32.mrf.mxu0
  %v649 = vadd.f32 0.0, %v648
  %v650 = vpop.f32.mrf.mxu0
  %v651 = vadd.f32 0.0, %v650
  %652 = vdwg.mxu0
  %653 = vmatpush.bf16.msra.mxu0 0
  %654 = vmatpush.bf16.msra.mxu0 0
  %655 = vmatpush.bf16.msra.mxu0 0
  %656 = vmatpush.bf16.msra.mxu0 0
  %657 = vmatpush.bf16.msra.mxu0 0
  %658 = vmatpush.bf16.msra.mxu0 0
  %659 = vmatpush.bf16.msra.mxu0 0
  %660 = vmatpush.bf16.msra.mxu0 %v601
  %661 = vmatmul.bf16.gmra.mxu0 %v609
  %v662 = vpop.f32.mrf.mxu0
  %v663 = vadd.f32 0.0, %v662
  %v664 = vpop.f32.mrf.mxu0
  %v665 = vadd.f32 0.0, %v664
  %666 = vdwg.mxu0
  %667 = vmatpush.bf16.msra.mxu0 0
  %668 = vmatpush.bf16.msra.mxu0 0
  %669 = vmatpush.bf16.msra.mxu0 0
  %670 = vmatpush.bf16.msra.mxu0 0
  %671 = vmatpush.bf16.msra.mxu0 0
  %672 = vmatpush.bf16.msra.mxu0 0
  %673 = vmatpush.bf16.msra.mxu0 0
  %674 = vmatpush.bf16.msra.mxu0 %v602
  %675 = vmatmul.bf16.gmra.mxu0 %v609
  %v676 = vpop.f32.mrf.mxu0
  %v677 = vadd.f32 0.0, %v676
  %v678 = vpop.f32.mrf.mxu0
  %v679 = vadd.f32 0.0, %v678
  %680 = vdwg.mxu0
  %v681 = vadd.f32 %v567, %v621
  %v682 = vadd.f32 %v568, %v635
  %v683 = vadd.f32 %v569, %v649
  %v684 = vadd.f32 %v570, %v663
  %v685 = vadd.f32 %v571, %v677
  %v686 = vadd.f32 %v572, %v623
  %v687 = vadd.f32 %v573, %v637
  %v688 = vadd.f32 %v574, %v651
  %v689 = vadd.f32 %v575, %v665
  %v690 = vadd.f32 %v576, %v679
  %s691 = scalar_lea.vmem %s0, 48
  %v692 = vld [vmem:[%s691] sm:$0xf]
  %v693 = vld [vmem:[%s691 + $0x4] sm:$0xf]
  %v696 = vunpack.c.l.b16 %v692
  %v697 = vunpack.c.l.b16 %v693
  %v698 = vpack.c.b16 %v697, %v696
  %699 = vrot.lane.b32.xlu0 %v49, 94
  %v700 = vpop.permute.xlu0 %699
  %701 = vrot.lane.b32.xlu0 %v50, 94
  %v702 = vpop.permute.xlu0 %701
  %703 = vrot.lane.b32.xlu0 %v51, 94
  %v704 = vpop.permute.xlu0 %703
  %705 = vrot.lane.b32.xlu0 %v52, 94
  %v706 = vpop.permute.xlu0 %705
  %707 = vrot.lane.b32.xlu0 %v53, 94
  %v708 = vpop.permute.xlu0 %707
  %709 = vrot.lane.b32.xlu0 %v54, 94
  %v710 = vpop.permute.xlu0 %709
  %vm711 = vcmask 769024
  %v712 = vsel %vm711, %v700, %v702
  %v713 = vsel %vm711, %v702, %v704
  %v714 = vsel %vm711, %v704, %v706
  %v715 = vsel %vm711, %v706, %v708
  %v716 = vsel %vm711, %v708, %v710
  %v723 = vsel %vm78, %v698, 0
  %725 = vmatpush.bf16.msra.mxu0 0
  %726 = vmatpush.bf16.msra.mxu0 0
  %727 = vmatpush.bf16.msra.mxu0 0
  %728 = vmatpush.bf16.msra.mxu0 0
  %729 = vmatpush.bf16.msra.mxu0 0
  %730 = vmatpush.bf16.msra.mxu0 0
  %731 = vmatpush.bf16.msra.mxu0 0
  %732 = vmatpush.bf16.msra.mxu0 %v712
  %733 = vmatmul.bf16.gmra.mxu0 %v723
  %v734 = vpop.f32.mrf.mxu0
  %v735 = vadd.f32 0.0, %v734
  %v736 = vpop.f32.mrf.mxu0
  %v737 = vadd.f32 0.0, %v736
  %738 = vdwg.mxu0
  %739 = vmatpush.bf16.msra.mxu0 0
  %740 = vmatpush.bf16.msra.mxu0 0
  %741 = vmatpush.bf16.msra.mxu0 0
  %742 = vmatpush.bf16.msra.mxu0 0
  %743 = vmatpush.bf16.msra.mxu0 0
  %744 = vmatpush.bf16.msra.mxu0 0
  %745 = vmatpush.bf16.msra.mxu0 0
  %746 = vmatpush.bf16.msra.mxu0 %v713
  %747 = vmatmul.bf16.gmra.mxu0 %v723
  %v748 = vpop.f32.mrf.mxu0
  %v749 = vadd.f32 0.0, %v748
  %v750 = vpop.f32.mrf.mxu0
  %v751 = vadd.f32 0.0, %v750
  %752 = vdwg.mxu0
  %753 = vmatpush.bf16.msra.mxu0 0
  %754 = vmatpush.bf16.msra.mxu0 0
  %755 = vmatpush.bf16.msra.mxu0 0
  %756 = vmatpush.bf16.msra.mxu0 0
  %757 = vmatpush.bf16.msra.mxu0 0
  %758 = vmatpush.bf16.msra.mxu0 0
  %759 = vmatpush.bf16.msra.mxu0 0
  %760 = vmatpush.bf16.msra.mxu0 %v714
  %761 = vmatmul.bf16.gmra.mxu0 %v723
  %v762 = vpop.f32.mrf.mxu0
  %v763 = vadd.f32 0.0, %v762
  %v764 = vpop.f32.mrf.mxu0
  %v765 = vadd.f32 0.0, %v764
  %766 = vdwg.mxu0
  %767 = vmatpush.bf16.msra.mxu0 0
  %768 = vmatpush.bf16.msra.mxu0 0
  %769 = vmatpush.bf16.msra.mxu0 0
  %770 = vmatpush.bf16.msra.mxu0 0
  %771 = vmatpush.bf16.msra.mxu0 0
  %772 = vmatpush.bf16.msra.mxu0 0
  %773 = vmatpush.bf16.msra.mxu0 0
  %774 = vmatpush.bf16.msra.mxu0 %v715
  %775 = vmatmul.bf16.gmra.mxu0 %v723
  %v776 = vpop.f32.mrf.mxu0
  %v777 = vadd.f32 0.0, %v776
  %v778 = vpop.f32.mrf.mxu0
  %v779 = vadd.f32 0.0, %v778
  %780 = vdwg.mxu0
  %781 = vmatpush.bf16.msra.mxu0 0
  %782 = vmatpush.bf16.msra.mxu0 0
  %783 = vmatpush.bf16.msra.mxu0 0
  %784 = vmatpush.bf16.msra.mxu0 0
  %785 = vmatpush.bf16.msra.mxu0 0
  %786 = vmatpush.bf16.msra.mxu0 0
  %787 = vmatpush.bf16.msra.mxu0 0
  %788 = vmatpush.bf16.msra.mxu0 %v716
  %789 = vmatmul.bf16.gmra.mxu0 %v723
  %v790 = vpop.f32.mrf.mxu0
  %v791 = vadd.f32 0.0, %v790
  %v792 = vpop.f32.mrf.mxu0
  %v793 = vadd.f32 0.0, %v792
  %794 = vdwg.mxu0
  %v795 = vadd.f32 %v681, %v735
  %v796 = vadd.f32 %v682, %v749
  %v797 = vadd.f32 %v683, %v763
  %v798 = vadd.f32 %v684, %v777
  %v799 = vadd.f32 %v685, %v791
  %v800 = vadd.f32 %v686, %v737
  %v801 = vadd.f32 %v687, %v751
  %v802 = vadd.f32 %v688, %v765
  %v803 = vadd.f32 %v689, %v779
  %v804 = vadd.f32 %v690, %v793
  %s805 = scalar_lea.vmem %s0, 56
  %v806 = vld [vmem:[%s805] sm:$0xf]
  %v807 = vld [vmem:[%s805 + $0x4] sm:$0xf]
  %v810 = vunpack.c.l.b16 %v806
  %v811 = vunpack.c.l.b16 %v807
  %v812 = vpack.c.b16 %v811, %v810
  %813 = vrot.lane.b32.xlu0 %v49, 93
  %v814 = vpop.permute.xlu0 %813
  %815 = vrot.lane.b32.xlu0 %v50, 93
  %v816 = vpop.permute.xlu0 %815
  %817 = vrot.lane.b32.xlu0 %v51, 93
  %v818 = vpop.permute.xlu0 %817
  %819 = vrot.lane.b32.xlu0 %v52, 93
  %v820 = vpop.permute.xlu0 %819
  %821 = vrot.lane.b32.xlu0 %v53, 93
  %v822 = vpop.permute.xlu0 %821
  %823 = vrot.lane.b32.xlu0 %v54, 93
  %v824 = vpop.permute.xlu0 %823
  %vm825 = vcmask 760832
  %v826 = vsel %vm825, %v814, %v816
  %v827 = vsel %vm825, %v816, %v818
  %v828 = vsel %vm825, %v818, %v820
  %v829 = vsel %vm825, %v820, %v822
  %v830 = vsel %vm825, %v822, %v824
  %v837 = vsel %vm78, %v812, 0
  %839 = vmatpush.bf16.msra.mxu0 0
  %840 = vmatpush.bf16.msra.mxu0 0
  %841 = vmatpush.bf16.msra.mxu0 0
  %842 = vmatpush.bf16.msra.mxu0 0
  %843 = vmatpush.bf16.msra.mxu0 0
  %844 = vmatpush.bf16.msra.mxu0 0
  %845 = vmatpush.bf16.msra.mxu0 0
  %846 = vmatpush.bf16.msra.mxu0 %v826
  %847 = vmatmul.bf16.gmra.mxu0 %v837
  %v848 = vpop.f32.mrf.mxu0
  %v849 = vadd.f32 0.0, %v848
  %v850 = vpop.f32.mrf.mxu0
  %v851 = vadd.f32 0.0, %v850
  %852 = vdwg.mxu0
  %853 = vmatpush.bf16.msra.mxu0 0
  %854 = vmatpush.bf16.msra.mxu0 0
  %855 = vmatpush.bf16.msra.mxu0 0
  %856 = vmatpush.bf16.msra.mxu0 0
  %857 = vmatpush.bf16.msra.mxu0 0
  %858 = vmatpush.bf16.msra.mxu0 0
  %859 = vmatpush.bf16.msra.mxu0 0
  %860 = vmatpush.bf16.msra.mxu0 %v827
  %861 = vmatmul.bf16.gmra.mxu0 %v837
  %v862 = vpop.f32.mrf.mxu0
  %v863 = vadd.f32 0.0, %v862
  %v864 = vpop.f32.mrf.mxu0
  %v865 = vadd.f32 0.0, %v864
  %866 = vdwg.mxu0
  %867 = vmatpush.bf16.msra.mxu0 0
  %868 = vmatpush.bf16.msra.mxu0 0
  %869 = vmatpush.bf16.msra.mxu0 0
  %870 = vmatpush.bf16.msra.mxu0 0
  %871 = vmatpush.bf16.msra.mxu0 0
  %872 = vmatpush.bf16.msra.mxu0 0
  %873 = vmatpush.bf16.msra.mxu0 0
  %874 = vmatpush.bf16.msra.mxu0 %v828
  %875 = vmatmul.bf16.gmra.mxu0 %v837
  %v876 = vpop.f32.mrf.mxu0
  %v877 = vadd.f32 0.0, %v876
  %v878 = vpop.f32.mrf.mxu0
  %v879 = vadd.f32 0.0, %v878
  %880 = vdwg.mxu0
  %881 = vmatpush.bf16.msra.mxu0 0
  %882 = vmatpush.bf16.msra.mxu0 0
  %883 = vmatpush.bf16.msra.mxu0 0
  %884 = vmatpush.bf16.msra.mxu0 0
  %885 = vmatpush.bf16.msra.mxu0 0
  %886 = vmatpush.bf16.msra.mxu0 0
  %887 = vmatpush.bf16.msra.mxu0 0
  %888 = vmatpush.bf16.msra.mxu0 %v829
  %889 = vmatmul.bf16.gmra.mxu0 %v837
  %v890 = vpop.f32.mrf.mxu0
  %v891 = vadd.f32 0.0, %v890
  %v892 = vpop.f32.mrf.mxu0
  %v893 = vadd.f32 0.0, %v892
  %894 = vdwg.mxu0
  %895 = vmatpush.bf16.msra.mxu0 0
  %896 = vmatpush.bf16.msra.mxu0 0
  %897 = vmatpush.bf16.msra.mxu0 0
  %898 = vmatpush.bf16.msra.mxu0 0
  %899 = vmatpush.bf16.msra.mxu0 0
  %900 = vmatpush.bf16.msra.mxu0 0
  %901 = vmatpush.bf16.msra.mxu0 0
  %902 = vmatpush.bf16.msra.mxu0 %v830
  %903 = vmatmul.bf16.gmra.mxu0 %v837
  %v904 = vpop.f32.mrf.mxu0
  %v905 = vadd.f32 0.0, %v904
  %v906 = vpop.f32.mrf.mxu0
  %v907 = vadd.f32 0.0, %v906
  %908 = vdwg.mxu0
  %v909 = vadd.f32 %v795, %v849
  %v910 = vadd.f32 %v796, %v863
  %v911 = vadd.f32 %v797, %v877
  %v912 = vadd.f32 %v798, %v891
  %v913 = vadd.f32 %v799, %v905
  %v914 = vadd.f32 %v800, %v851
  %v915 = vadd.f32 %v801, %v865
  %v916 = vadd.f32 %v802, %v879
  %v917 = vadd.f32 %v803, %v893
  %v918 = vadd.f32 %v804, %v907
  %s919 = scalar_lea.vmem %s0, 64
  %v920 = vld [vmem:[%s919] sm:$0xf]
  %v921 = vld [vmem:[%s919 + $0x4] sm:$0xf]
  %v924 = vunpack.c.l.b16 %v920
  %v925 = vunpack.c.l.b16 %v921
  %v926 = vpack.c.b16 %v925, %v924
  %927 = vrot.lane.b32.xlu0 %v49, 92
  %v928 = vpop.permute.xlu0 %927
  %929 = vrot.lane.b32.xlu0 %v50, 92
  %v930 = vpop.permute.xlu0 %929
  %931 = vrot.lane.b32.xlu0 %v51, 92
  %v932 = vpop.permute.xlu0 %931
  %933 = vrot.lane.b32.xlu0 %v52, 92
  %v934 = vpop.permute.xlu0 %933
  %935 = vrot.lane.b32.xlu0 %v53, 92
  %v936 = vpop.permute.xlu0 %935
  %937 = vrot.lane.b32.xlu0 %v54, 92
  %v938 = vpop.permute.xlu0 %937
  %vm939 = vcmask 752640
  %v940 = vsel %vm939, %v928, %v930
  %v941 = vsel %vm939, %v930, %v932
  %v942 = vsel %vm939, %v932, %v934
  %v943 = vsel %vm939, %v934, %v936
  %v944 = vsel %vm939, %v936, %v938
  %v951 = vsel %vm78, %v926, 0
  %953 = vmatpush.bf16.msra.mxu0 0
  %954 = vmatpush.bf16.msra.mxu0 0
  %955 = vmatpush.bf16.msra.mxu0 0
  %956 = vmatpush.bf16.msra.mxu0 0
  %957 = vmatpush.bf16.msra.mxu0 0
  %958 = vmatpush.bf16.msra.mxu0 0
  %959 = vmatpush.bf16.msra.mxu0 0
  %960 = vmatpush.bf16.msra.mxu0 %v940
  %961 = vmatmul.bf16.gmra.mxu0 %v951
  %v962 = vpop.f32.mrf.mxu0
  %v963 = vadd.f32 0.0, %v962
  %v964 = vpop.f32.mrf.mxu0
  %v965 = vadd.f32 0.0, %v964
  %966 = vdwg.mxu0
  %967 = vmatpush.bf16.msra.mxu0 0
  %968 = vmatpush.bf16.msra.mxu0 0
  %969 = vmatpush.bf16.msra.mxu0 0
  %970 = vmatpush.bf16.msra.mxu0 0
  %971 = vmatpush.bf16.msra.mxu0 0
  %972 = vmatpush.bf16.msra.mxu0 0
  %973 = vmatpush.bf16.msra.mxu0 0
  %974 = vmatpush.bf16.msra.mxu0 %v941
  %975 = vmatmul.bf16.gmra.mxu0 %v951
  %v976 = vpop.f32.mrf.mxu0
  %v977 = vadd.f32 0.0, %v976
  %v978 = vpop.f32.mrf.mxu0
  %v979 = vadd.f32 0.0, %v978
  %980 = vdwg.mxu0
  %981 = vmatpush.bf16.msra.mxu0 0
  %982 = vmatpush.bf16.msra.mxu0 0
  %983 = vmatpush.bf16.msra.mxu0 0
  %984 = vmatpush.bf16.msra.mxu0 0
  %985 = vmatpush.bf16.msra.mxu0 0
  %986 = vmatpush.bf16.msra.mxu0 0
  %987 = vmatpush.bf16.msra.mxu0 0
  %988 = vmatpush.bf16.msra.mxu0 %v942
  %989 = vmatmul.bf16.gmra.mxu0 %v951
  %v990 = vpop.f32.mrf.mxu0
  %v991 = vadd.f32 0.0, %v990
  %v992 = vpop.f32.mrf.mxu0
  %v993 = vadd.f32 0.0, %v992
  %994 = vdwg.mxu0
  %995 = vmatpush.bf16.msra.mxu0 0
  %996 = vmatpush.bf16.msra.mxu0 0
  %997 = vmatpush.bf16.msra.mxu0 0
  %998 = vmatpush.bf16.msra.mxu0 0
  %999 = vmatpush.bf16.msra.mxu0 0
  %1000 = vmatpush.bf16.msra.mxu0 0
  %1001 = vmatpush.bf16.msra.mxu0 0
  %1002 = vmatpush.bf16.msra.mxu0 %v943
  %1003 = vmatmul.bf16.gmra.mxu0 %v951
  %v1004 = vpop.f32.mrf.mxu0
  %v1005 = vadd.f32 0.0, %v1004
  %v1006 = vpop.f32.mrf.mxu0
  %v1007 = vadd.f32 0.0, %v1006
  %1008 = vdwg.mxu0
  %1009 = vmatpush.bf16.msra.mxu0 0
  %1010 = vmatpush.bf16.msra.mxu0 0
  %1011 = vmatpush.bf16.msra.mxu0 0
  %1012 = vmatpush.bf16.msra.mxu0 0
  %1013 = vmatpush.bf16.msra.mxu0 0
  %1014 = vmatpush.bf16.msra.mxu0 0
  %1015 = vmatpush.bf16.msra.mxu0 0
  %1016 = vmatpush.bf16.msra.mxu0 %v944
  %1017 = vmatmul.bf16.gmra.mxu0 %v951
  %v1018 = vpop.f32.mrf.mxu0
  %v1019 = vadd.f32 0.0, %v1018
  %v1020 = vpop.f32.mrf.mxu0
  %v1021 = vadd.f32 0.0, %v1020
  %1022 = vdwg.mxu0
  %v1023 = vadd.f32 %v909, %v963
  %v1024 = vadd.f32 %v910, %v977
  %v1025 = vadd.f32 %v911, %v991
  %v1026 = vadd.f32 %v912, %v1005
  %v1027 = vadd.f32 %v913, %v1019
  %v1028 = vadd.f32 %v914, %v965
  %v1029 = vadd.f32 %v915, %v979
  %v1030 = vadd.f32 %v916, %v993
  %v1031 = vadd.f32 %v917, %v1007
  %v1032 = vadd.f32 %v918, %v1021
  %v1033 = vld [vmem:[%s1] sm:$0xff]
  %v1034 = vld [vmem:[%s1 + $0x8] sm:$0xff]
  %1036 = vset.pattern.permute.xlu0 0
  %1037 = vperm.xlu0 %1036, %v1033
  %v1038 = vpop.permute.xlu0 %1037
  %1041 = vset.pattern.permute.xlu0 0
  %1042 = vperm.xlu0 %1041, %v1034
  %v1043 = vpop.permute.xlu0 %1042
  %v1045 = vadd.f32 %v1023, %v1038
  %v1046 = vadd.f32 %v1024, %v1038
  %v1047 = vadd.f32 %v1025, %v1038
  %v1048 = vadd.f32 %v1026, %v1038
  %v1049 = vadd.f32 %v1027, %v1038
  %v1050 = vadd.f32 %v1028, %v1043
  %v1051 = vadd.f32 %v1029, %v1043
  %v1052 = vadd.f32 %v1030, %v1043
  %v1053 = vadd.f32 %v1031, %v1043
  %v1054 = vadd.f32 %v1032, %v1043
  %v1055 = vmax.f32 %v1045, 0.0
  %v1056 = vmax.f32 %v1046, 0.0
  %v1057 = vmax.f32 %v1047, 0.0
  %v1058 = vmax.f32 %v1048, 0.0
  %v1059 = vmax.f32 %v1049, 0.0
  %v1060 = vmax.f32 %v1050, 0.0
  %v1061 = vmax.f32 %v1051, 0.0
  %v1062 = vmax.f32 %v1052, 0.0
  %v1063 = vmax.f32 %v1053, 0.0
  %v1064 = vmax.f32 %v1054, 0.0
  %1065 = vst [vmem:[%s3] sm:$0xff] %v1055
  %1066 = vst [vmem:[%s3 + $0x8] sm:$0xff] %v1056
  %1067 = vst [vmem:[%s3 + $0x10] sm:$0xff] %v1057
  %1068 = vst [vmem:[%s3 + $0x18] sm:$0xff] %v1058
  %1069 = vst [vmem:[%s3 + $0x20] sm:$0xff] %v1059
  %1070 = vst [vmem:[%s3 + $0x28] sm:$0xff] %v1060
  %1071 = vst [vmem:[%s3 + $0x30] sm:$0xff] %v1061
  %1072 = vst [vmem:[%s3 + $0x38] sm:$0xff] %v1062
  %1073 = vst [vmem:[%s3 + $0x40] sm:$0xff] %v1063
  %1074 = vst [vmem:[%s3 + $0x48] sm:$0xff] %v1064
  // Predicated region
  $region14: #{_forward_impl.1} parent=0 // pred_check
    _
  $region15: #{_forward_impl.1} parent=0 // pred_check_branch
    %1076 = sbr.rel (0) target = $region17
  $region16: #{_forward_impl.1} parent=0 // pred_region
    _
  $region17: #{_forward_impl.1} parent=0 // pred_fallthru
    _
  // Predicated region
  $region18: #{_forward_impl.1} parent=0 // pred_check
    _
  $region19: #{_forward_impl.1} parent=0 // pred_check_branch
    %1078 = sbr.rel (0) target = $region21
  $region20: #{_forward_impl.1} parent=0 // pred_region
    _
  $region21: #{_forward_impl.1} parent=0 // pred_fallthru
    _

</llo_original>
